<compile_context>
chip_gen: v5e
topology: v5e:2x2
jax: 0.10.0
libtpu: 0.0.40
codegen_flags: <defaults>
</compile_context>

<pallas_src>
from functools import partial

import numpy as np
import jax
import jax.numpy as jnp
from jax.experimental import pallas as pl
from jax.experimental.pallas import tpu as pltpu

KX = 4   # torch.topk(x, 4)            -> values only (largest, sorted)
KZ = 3   # torch.topk(z, 3, dim=-1)    -> values + indices (sorted=False)


def _fused_topk_kernel(x_ref, y_ref, z_ref, f_ref, i_ref, xz_ref, *, cy):
    """One fused kernel for all three torch.topk calls.

    Inputs  : x (Rx,Lx), y (Ry, Gy*cy), z (Rz,Lz) -- whole-array VMEM refs.
    Outputs : f_ref (Rx+Rz+Ry, 128) f32 slab:
                rows 0:Rx          lanes 0:KX -> topk(x, 4) values
                rows Rx:Rx+Rz      lanes 0:KZ -> topk(z, 3) values
                rows Rx+Rz:(+Ry)   lanes 0:cy -> min(y, dim=2) values
              i_ref (Rz, 128) int32 slab, lanes 0:KZ -> topk(z, 3) indices.
    Scratch : xz_ref (Rx+Rz, max(Lx,Lz)) f32 combined x/z tile.
    """
    Rx, Lx = x_ref.shape
    Rz, Lz = z_ref.shape
    Ry = y_ref.shape[0]
    Gy = y_ref.shape[1] // cy
    Rc, Lc = xz_ref.shape
    W = f_ref.shape[1]
    NEG = jnp.float32(-jnp.inf)

    # ---- stage x and z into ONE combined tile (z's missing lanes = -inf) ----
    xz_ref[...] = jnp.full((Rc, Lc), NEG, dtype=xz_ref.dtype)
    xz_ref[0:Rx, 0:Lx] = x_ref[...]
    xz_ref[Rx:Rc, 0:Lz] = z_ref[...]
    comb = xz_ref[...]

    # ---- single unrolled greedy top-K (K = max(KX, KZ)) over combined tile --
    # Previously selected positions are masked by *index* (boolean `taken`),
    # so duplicates and -inf padding are handled correctly.
    K = max(KX, KZ)
    col = jax.lax.broadcasted_iota(jnp.int32, (Rc, Lc), 1)
    colf = col.astype(jnp.float32)
    vals, idxs = [], []
    taken = None
    for step in range(K):                                     # K <= 4, unrolled
        cur = comb if taken is None else jnp.where(taken, NEG, comb)
        m = jnp.max(cur, axis=1, keepdims=True)               # (Rc, 1)
        vals.append(m)
        if step < K - 1 or step < KZ:
            # lowest-index not-yet-taken occurrence of the current max;
            # arg-reduce done in f32 (lane values 0..Lc are exact in f32).
            is_cand = cur == m
            if taken is not None:
                is_cand = jnp.logical_and(is_cand, jnp.logical_not(taken))
            idx = jnp.min(jnp.where(is_cand, colf, jnp.float32(Lc)),
                          axis=1, keepdims=True).astype(jnp.int32)   # (Rc, 1)
            idxs.append(idx)
            if step < K - 1:
                sel = col == idx
                taken = sel if taken is None else jnp.logical_or(taken, sel)

    # ---- pack the K value columns into lanes 0..K-1 of a dense (Rc, 128)
    #      tile (lane-iota selects) and write with ONE full, unmasked store ---
    lane_c = jax.lax.broadcasted_iota(jnp.int32, (Rc, W), 1)
    vpack = jnp.zeros((Rc, W), f_ref.dtype)
    for i, c in enumerate(vals):
        vpack = jnp.where(lane_c == i, c.astype(f_ref.dtype), vpack)
    f_ref[0:Rc, :] = vpack

    # ---- pack the KZ z-index columns into a dense int32 tile (one store) ----
    lane_z = jax.lax.broadcasted_iota(jnp.int32, (Rz, W), 1)
    ipack = jnp.zeros((Rz, W), jnp.int32)
    for i in range(KZ):
        ipack = jnp.where(lane_z == i, idxs[i][Rx:Rc, :], ipack)
    i_ref[...] = ipack

    # ---- y: torch.topk(y, k=1, dim=2, largest=False) == min over dim 2 ------
    # y arrives as one lane-dense (Ry, Gy*cy) tile; reduce with Gy-1
    # elementwise VPU mins over the cy-lane groups, then one store.
    yv = y_ref[...]
    ym = yv[:, 0:cy]
    for g in range(1, Gy):
        ym = jnp.minimum(ym, yv[:, g * cy:(g + 1) * cy])
    f_ref[Rc:Rc + Ry, 0:cy] = ym.astype(f_ref.dtype)
    # (lanes cy:128 of the y rows are never read by the wrapper)


@jax.jit
def model_forward(x, y, z):
    Bx, By, Bz = x.shape, y.shape, z.shape            # (2,4,16) (2,5,9,11) (2,3,8,10)

    Rx, Lx = int(np.prod(Bx[:-1])), Bx[-1]            # (8, 16)
    Ry, Gy, Cy = int(np.prod(By[:2])), By[2], By[3]   # (10, 9, 11)
    Rz, Lz = int(np.prod(Bz[:-1])), Bz[-1]            # (48, 10)
    Rc, Lc = Rx + Rz, max(Lx, Lz)                     # combined x/z tile (56, 16)
    W = 128                                           # lane-dense slab width

    # Leading-dim / trailing-dim merges only -> free reshapes (no data movement).
    x2 = x.reshape(Rx, Lx)
    y2 = y.reshape(Ry, Gy * Cy)
    z2 = z.reshape(Rz, Lz)

    # Grid-less call: whole arrays in VMEM, no pipeline scaffolding.
    fslab, islab = pl.pallas_call(
        partial(_fused_topk_kernel, cy=Cy),
        out_shape=(
            jax.ShapeDtypeStruct((Rc + Ry, W), jnp.float32),   # packed values slab
            jax.ShapeDtypeStruct((Rz, W), jnp.int32),          # packed z indices slab
        ),
        scratch_shapes=[pltpu.VMEM((Rc, Lc), jnp.float32)],
    )(x2, y2, z2)

    # Slice the packed regions back out (tiny XLA slices; layout plumbing only).
    x_out = fslab[0:Rx, 0:KX].reshape(Bx[:-1] + (KX,))           # (2, 4, 4)
    z_out = fslab[Rx:Rc, 0:KZ].reshape(Bz[:-1] + (KZ,))          # (2, 3, 8, 3)
    y_out = fslab[Rc:Rc + Ry, 0:Cy].reshape(By[:2] + (1, Cy))    # (2, 5, 1, 11)
    idx_out = islab[:, 0:KZ].reshape(Bz[:-1] + (KZ,))            # (2, 3, 8, 3)
    return x_out, y_out, z_out, idx_out


if __name__ == "__main__":
    key = jax.random.PRNGKey(0)
    kx, ky, kz = jax.random.split(key, 3)

    x = jax.random.uniform(kx, (2, 4, 16), dtype=jnp.float32)
    y = jax.random.uniform(ky, (2, 5, 9, 11), dtype=jnp.float32)
    z = jax.random.uniform(kz, (2, 3, 8, 10), dtype=jnp.float32)

    out_x, out_y, out_z, out_idx = jax.block_until_ready(model_forward(x, y, z))

    # sanity checks against XLA reference ops (pure selection -> exact values)
    ref_x, _ = jax.lax.top_k(x, KX)
    np.testing.assert_allclose(np.asarray(out_x), np.asarray(ref_x), rtol=1e-6)

    ref_y = jnp.min(y, axis=2, keepdims=True)
    np.testing.assert_allclose(np.asarray(out_y), np.asarray(ref_y), rtol=1e-6)

    ref_zv, ref_zi = jax.lax.top_k(z, KZ)
    np.testing.assert_allclose(np.asarray(out_z), np.asarray(ref_zv), rtol=1e-6)
    np.testing.assert_array_equal(np.asarray(out_idx), np.asarray(ref_zi))

    assert out_x.shape == (2, 4, 4)
    assert out_y.shape == (2, 5, 1, 11)
    assert out_z.shape == (2, 3, 8, 3) and out_idx.shape == (2, 3, 8, 3)

    print("KERNEL_OK")
</pallas_src>

<mosaic_0001>
module attributes {stable_mosaic.version = 11 : i64} {
  func.func @_fused_topk_kernel(%arg0: memref<8x16xf32, #tpu.memory_space<vmem>>, %arg1: memref<10x99xf32, #tpu.memory_space<vmem>>, %arg2: memref<48x10xf32, #tpu.memory_space<vmem>>, %arg3: memref<66x128xf32, #tpu.memory_space<vmem>>, %arg4: memref<48x128xi32, #tpu.memory_space<vmem>>, %arg5: memref<56x16xf32, #tpu.memory_space<vmem>>) attributes {dimension_semantics = [], scalar_prefetch = 0 : i64, scratch_operands = 1 : i64, tpu.core_type = #tpu.core_type<tc>} {
    %cst = arith.constant 0xFF800000 : f32
    %0 = vector.broadcast %cst : f32 to vector<56x16xf32>
    %c0 = arith.constant 0 : index
    %c0_0 = arith.constant 0 : index
    %1 = vector.load %arg5[%c0, %c0_0] : memref<56x16xf32, #tpu.memory_space<vmem>>, vector<56x16xf32>
    tpu.vector_store %arg5[%c0, %c0_0], %0 {strides = array<i32>} : memref<56x16xf32, #tpu.memory_space<vmem>>, vector<56x16xf32>,
    %c0_1 = arith.constant 0 : index
    %c0_2 = arith.constant 0 : index
    %2 = vector.load %arg0[%c0_1, %c0_2] : memref<8x16xf32, #tpu.memory_space<vmem>>, vector<8x16xf32>
    %c0_3 = arith.constant 0 : index
    %c0_4 = arith.constant 0 : index
    %3 = vector.load %arg5[%c0_3, %c0_4] : memref<56x16xf32, #tpu.memory_space<vmem>>, vector<8x16xf32>
    tpu.vector_store %arg5[%c0_3, %c0_4], %2 {strides = array<i32>} : memref<56x16xf32, #tpu.memory_space<vmem>>, vector<8x16xf32>,
    %c0_5 = arith.constant 0 : index
    %c0_6 = arith.constant 0 : index
    %4 = vector.load %arg2[%c0_5, %c0_6] : memref<48x10xf32, #tpu.memory_space<vmem>>, vector<48x10xf32>
    %c8 = arith.constant 8 : index
    %c0_7 = arith.constant 0 : index
    %5 = vector.load %arg5[%c8, %c0_7] : memref<56x16xf32, #tpu.memory_space<vmem>>, vector<48x10xf32>
    tpu.vector_store %arg5[%c8, %c0_7], %4 {strides = array<i32>} : memref<56x16xf32, #tpu.memory_space<vmem>>, vector<48x10xf32>,
    %c0_8 = arith.constant 0 : index
    %c0_9 = arith.constant 0 : index
    %6 = vector.load %arg5[%c0_8, %c0_9] : memref<56x16xf32, #tpu.memory_space<vmem>>, vector<56x16xf32>
    %7 = tpu.iota {dimensions = array<i32: 1>} : vector<56x16xi32>
    %8 = arith.sitofp %7 : vector<56x16xi32> to vector<56x16xf32>
    %cst_10 = arith.constant dense<0xFF800000> : vector<56xf32>
    %9 = vector.multi_reduction <maximumf>, %6, %cst_10 [1] : vector<56x16xf32> to vector<56xf32>
    %10 = vector.shape_cast %9 : vector<56xf32> to vector<56x1xf32>
    %11 = vector.broadcast %10 : vector<56x1xf32> to vector<56x16xf32>
    %12 = arith.cmpf oeq, %6, %11 : vector<56x16xf32>
    %cst_11 = arith.constant 1.600000e+01 : f32
    %13 = vector.broadcast %cst_11 : f32 to vector<56x16xf32>
    %14 = arith.select %12, %8, %13 : vector<56x16xi1>, vector<56x16xf32>
    %cst_12 = arith.constant dense<0x7F800000> : vector<56xf32>
    %15 = vector.multi_reduction <minimumf>, %14, %cst_12 [1] : vector<56x16xf32> to vector<56xf32>
    %16 = vector.shape_cast %15 : vector<56xf32> to vector<56x1xf32>
    %17 = arith.fptosi %16 : vector<56x1xf32> to vector<56x1xi32>
    %18 = vector.broadcast %17 : vector<56x1xi32> to vector<56x16xi32>
    %19 = arith.cmpi eq, %7, %18 : vector<56x16xi32>
    %cst_13 = arith.constant 0xFF800000 : f32
    %20 = vector.broadcast %cst_13 : f32 to vector<56x16xf32>
    %21 = arith.select %19, %20, %6 : vector<56x16xi1>, vector<56x16xf32>
    %cst_14 = arith.constant dense<0xFF800000> : vector<56xf32>
    %22 = vector.multi_reduction <maximumf>, %21, %cst_14 [1] : vector<56x16xf32> to vector<56xf32>
    %23 = vector.shape_cast %22 : vector<56xf32> to vector<56x1xf32>
    %24 = vector.broadcast %23 : vector<56x1xf32> to vector<56x16xf32>
    %25 = arith.cmpf oeq, %21, %24 : vector<56x16xf32>
    %cst_15 = arith.constant dense<true> : vector<56x16xi1>
    %26 = arith.xori %19, %cst_15 : vector<56x16xi1>
    %27 = arith.andi %25, %26 : vector<56x16xi1>
    %cst_16 = arith.constant 1.600000e+01 : f32
    %28 = vector.broadcast %cst_16 : f32 to vector<56x16xf32>
    %29 = arith.select %27, %8, %28 : vector<56x16xi1>, vector<56x16xf32>
    %cst_17 = arith.constant dense<0x7F800000> : vector<56xf32>
    %30 = vector.multi_reduction <minimumf>, %29, %cst_17 [1] : vector<56x16xf32> to vector<56xf32>
    %31 = vector.shape_cast %30 : vector<56xf32> to vector<56x1xf32>
    %32 = arith.fptosi %31 : vector<56x1xf32> to vector<56x1xi32>
    %33 = vector.broadcast %32 : vector<56x1xi32> to vector<56x16xi32>
    %34 = arith.cmpi eq, %7, %33 : vector<56x16xi32>
    %35 = arith.ori %19, %34 : vector<56x16xi1>
    %cst_18 = arith.constant 0xFF800000 : f32
    %36 = vector.broadcast %cst_18 : f32 to vector<56x16xf32>
    %37 = arith.select %35, %36, %6 : vector<56x16xi1>, vector<56x16xf32>
    %cst_19 = arith.constant dense<0xFF800000> : vector<56xf32>
    %38 = vector.multi_reduction <maximumf>, %37, %cst_19 [1] : vector<56x16xf32> to vector<56xf32>
    %39 = vector.shape_cast %38 : vector<56xf32> to vector<56x1xf32>
    %40 = vector.broadcast %39 : vector<56x1xf32> to vector<56x16xf32>
    %41 = arith.cmpf oeq, %37, %40 : vector<56x16xf32>
    %cst_20 = arith.constant dense<true> : vector<56x16xi1>
    %42 = arith.xori %35, %cst_20 : vector<56x16xi1>
    %43 = arith.andi %41, %42 : vector<56x16xi1>
    %cst_21 = arith.constant 1.600000e+01 : f32
    %44 = vector.broadcast %cst_21 : f32 to vector<56x16xf32>
    %45 = arith.select %43, %8, %44 : vector<56x16xi1>, vector<56x16xf32>
    %cst_22 = arith.constant dense<0x7F800000> : vector<56xf32>
    %46 = vector.multi_reduction <minimumf>, %45, %cst_22 [1] : vector<56x16xf32> to vector<56xf32>
    %47 = vector.shape_cast %46 : vector<56xf32> to vector<56x1xf32>
    %48 = arith.fptosi %47 : vector<56x1xf32> to vector<56x1xi32>
    %49 = vector.broadcast %48 : vector<56x1xi32> to vector<56x16xi32>
    %50 = arith.cmpi eq, %7, %49 : vector<56x16xi32>
    %51 = arith.ori %35, %50 : vector<56x16xi1>
    %cst_23 = arith.constant 0xFF800000 : f32
    %52 = vector.broadcast %cst_23 : f32 to vector<56x16xf32>
    %53 = arith.select %51, %52, %6 : vector<56x16xi1>, vector<56x16xf32>
    %cst_24 = arith.constant dense<0xFF800000> : vector<56xf32>
    %54 = vector.multi_reduction <maximumf>, %53, %cst_24 [1] : vector<56x16xf32> to vector<56xf32>
    %55 = vector.shape_cast %54 : vector<56xf32> to vector<56x1xf32>
    %56 = tpu.iota {dimensions = array<i32: 1>} : vector<56x128xi32>
    %cst_25 = arith.constant 0.000000e+00 : f32
    %57 = vector.broadcast %cst_25 : f32 to vector<56x128xf32>
    %c0_i32 = arith.constant 0 : i32
    %58 = vector.broadcast %c0_i32 : i32 to vector<56x128xi32>
    %59 = arith.cmpi eq, %56, %58 : vector<56x128xi32>
    %60 = vector.shape_cast %10 : vector<56x1xf32> to vector<56x1xf32>
    %61 = vector.broadcast %60 : vector<56x1xf32> to vector<56x128xf32>
    %62 = arith.select %59, %61, %57 : vector<56x128xi1>, vector<56x128xf32>
    %c1_i32 = arith.constant 1 : i32
    %63 = vector.broadcast %c1_i32 : i32 to vector<56x128xi32>
    %64 = arith.cmpi eq, %56, %63 : vector<56x128xi32>
    %65 = vector.shape_cast %23 : vector<56x1xf32> to vector<56x1xf32>
    %66 = vector.broadcast %65 : vector<56x1xf32> to vector<56x128xf32>
    %67 = arith.select %64, %66, %62 : vector<56x128xi1>, vector<56x128xf32>
    %c2_i32 = arith.constant 2 : i32
    %68 = vector.broadcast %c2_i32 : i32 to vector<56x128xi32>
    %69 = arith.cmpi eq, %56, %68 : vector<56x128xi32>
    %70 = vector.shape_cast %39 : vector<56x1xf32> to vector<56x1xf32>
    %71 = vector.broadcast %70 : vector<56x1xf32> to vector<56x128xf32>
    %72 = arith.select %69, %71, %67 : vector<56x128xi1>, vector<56x128xf32>
    %c3_i32 = arith.constant 3 : i32
    %73 = vector.broadcast %c3_i32 : i32 to vector<56x128xi32>
    %74 = arith.cmpi eq, %56, %73 : vector<56x128xi32>
    %75 = vector.shape_cast %55 : vector<56x1xf32> to vector<56x1xf32>
    %76 = vector.broadcast %75 : vector<56x1xf32> to vector<56x128xf32>
    %77 = arith.select %74, %76, %72 : vector<56x128xi1>, vector<56x128xf32>
    %c0_26 = arith.constant 0 : index
    %c0_27 = arith.constant 0 : index
    %78 = vector.load %arg3[%c0_26, %c0_27] : memref<66x128xf32, #tpu.memory_space<vmem>>, vector<56x128xf32>
    tpu.vector_store %arg3[%c0_26, %c0_27], %77 {strides = array<i32>} : memref<66x128xf32, #tpu.memory_space<vmem>>, vector<56x128xf32>,
    %79 = tpu.iota {dimensions = array<i32: 1>} : vector<48x128xi32>
    %c0_i32_28 = arith.constant 0 : i32
    %80 = vector.broadcast %c0_i32_28 : i32 to vector<48x128xi32>
    %c0_i32_29 = arith.constant 0 : i32
    %81 = vector.broadcast %c0_i32_29 : i32 to vector<48x128xi32>
    %82 = arith.cmpi eq, %79, %81 : vector<48x128xi32>
    %83 = vector.extract_strided_slice %17 {offsets = [8, 0], sizes = [48, 1], strides = [1, 1]} : vector<56x1xi32> to vector<48x1xi32>
    %84 = vector.shape_cast %83 : vector<48x1xi32> to vector<48x1xi32>
    %85 = vector.broadcast %84 : vector<48x1xi32> to vector<48x128xi32>
    %86 = arith.select %82, %85, %80 : vector<48x128xi1>, vector<48x128xi32>
    %c1_i32_30 = arith.constant 1 : i32
    %87 = vector.broadcast %c1_i32_30 : i32 to vector<48x128xi32>
    %88 = arith.cmpi eq, %79, %87 : vector<48x128xi32>
    %89 = vector.extract_strided_slice %32 {offsets = [8, 0], sizes = [48, 1], strides = [1, 1]} : vector<56x1xi32> to vector<48x1xi32>
    %90 = vector.shape_cast %89 : vector<48x1xi32> to vector<48x1xi32>
    %91 = vector.broadcast %90 : vector<48x1xi32> to vector<48x128xi32>
    %92 = arith.select %88, %91, %86 : vector<48x128xi1>, vector<48x128xi32>
    %c2_i32_31 = arith.constant 2 : i32
    %93 = vector.broadcast %c2_i32_31 : i32 to vector<48x128xi32>
    %94 = arith.cmpi eq, %79, %93 : vector<48x128xi32>
    %95 = vector.extract_strided_slice %48 {offsets = [8, 0], sizes = [48, 1], strides = [1, 1]} : vector<56x1xi32> to vector<48x1xi32>
    %96 = vector.shape_cast %95 : vector<48x1xi32> to vector<48x1xi32>
    %97 = vector.broadcast %96 : vector<48x1xi32> to vector<48x128xi32>
    %98 = arith.select %94, %97, %92 : vector<48x128xi1>, vector<48x128xi32>
    %c0_32 = arith.constant 0 : index
    %c0_33 = arith.constant 0 : index
    %99 = vector.load %arg4[%c0_32, %c0_33] : memref<48x128xi32, #tpu.memory_space<vmem>>, vector<48x128xi32>
    tpu.vector_store %arg4[%c0_32, %c0_33], %98 {strides = array<i32>} : memref<48x128xi32, #tpu.memory_space<vmem>>, vector<48x128xi32>,
    %c0_34 = arith.constant 0 : index
    %c0_35 = arith.constant 0 : index
    %100 = vector.load %arg1[%c0_34, %c0_35] : memref<10x99xf32, #tpu.memory_space<vmem>>, vector<10x99xf32>
    %101 = vector.extract_strided_slice %100 {offsets = [0, 0], sizes = [10, 11], strides = [1, 1]} : vector<10x99xf32> to vector<10x11xf32>
    %102 = vector.extract_strided_slice %100 {offsets = [0, 11], sizes = [10, 11], strides = [1, 1]} : vector<10x99xf32> to vector<10x11xf32>
    %103 = arith.minimumf %101, %102 : vector<10x11xf32>
    %104 = vector.extract_strided_slice %100 {offsets = [0, 22], sizes = [10, 11], strides = [1, 1]} : vector<10x99xf32> to vector<10x11xf32>
    %105 = arith.minimumf %103, %104 : vector<10x11xf32>
    %106 = vector.extract_strided_slice %100 {offsets = [0, 33], sizes = [10, 11], strides = [1, 1]} : vector<10x99xf32> to vector<10x11xf32>
    %107 = arith.minimumf %105, %106 : vector<10x11xf32>
    %108 = vector.extract_strided_slice %100 {offsets = [0, 44], sizes = [10, 11], strides = [1, 1]} : vector<10x99xf32> to vector<10x11xf32>
    %109 = arith.minimumf %107, %108 : vector<10x11xf32>
    %110 = vector.extract_strided_slice %100 {offsets = [0, 55], sizes = [10, 11], strides = [1, 1]} : vector<10x99xf32> to vector<10x11xf32>
    %111 = arith.minimumf %109, %110 : vector<10x11xf32>
    %112 = vector.extract_strided_slice %100 {offsets = [0, 66], sizes = [10, 11], strides = [1, 1]} : vector<10x99xf32> to vector<10x11xf32>
    %113 = arith.minimumf %111, %112 : vector<10x11xf32>
    %114 = vector.extract_strided_slice %100 {offsets = [0, 77], sizes = [10, 11], strides = [1, 1]} : vector<10x99xf32> to vector<10x11xf32>
    %115 = arith.minimumf %113, %114 : vector<10x11xf32>
    %116 = vector.extract_strided_slice %100 {offsets = [0, 88], sizes = [10, 11], strides = [1, 1]} : vector<10x99xf32> to vector<10x11xf32>
    %117 = arith.minimumf %115, %116 : vector<10x11xf32>
    %c56 = arith.constant 56 : index
    %c0_36 = arith.constant 0 : index
    %118 = vector.load %arg3[%c56, %c0_36] : memref<66x128xf32, #tpu.memory_space<vmem>>, vector<10x11xf32>
    tpu.vector_store %arg3[%c56, %c0_36], %117 {strides = array<i32>} : memref<66x128xf32, #tpu.memory_space<vmem>>, vector<10x11xf32>,
    return
  }
}

</mosaic_0001>

<llo_original>
// kernel: model_forward.1
$region0: #{model_forward.1}
  #allocation0 [shape = 'u32[]', space=smem, size = 0x4, offset = 0x4, fixed_abs, tag = 'smem constant byte address 0x4 - core index']
  #allocation1 [shape = 'u32[72,128]{1,0:T(1,128)}', space=vmem, size = 0x9000, scoped, tag = 'internal scratch']
  #allocation2 [shape = 'f32[56,16]{1,0:T(8,128)}', space=vmem, size = 0x7000, scoped, tag = 'scratch operand']
  %s0 = inlined_call_operand.vmem [shape: f32[8,16], index: 0, kind: input, shape index: {}]
  %s1 = inlined_call_operand.vmem [shape: f32[10,99], index: 1, kind: input, shape index: {}]
  %s2 = inlined_call_operand.vmem [shape: f32[48,10], index: 2, kind: input, shape index: {}]
  %s3 = inlined_call_operand.vmem [shape: f32[66,128], index: 3, kind: output, shape index: {0}]
  %s4 = inlined_call_operand.vmem [shape: s32[48,128], index: 4, kind: output, shape index: {1}]
  %5 = xla_tuple %s3, %s4
  %s6 = sld [smem:[#allocation0]]
  $region30: #{model_forward.1} parent=0
    _
  %s8 = ssub.s32 1, %s6
  %s9 = scalar_select 0, %s8, %s6
  // Predicated region
  $region2: #{model_forward.1} parent=0 // pred_check
    _
  $region3: #{model_forward.1} parent=0 // pred_check_branch
    %11 = sbr.rel (0) target = $region5
  $region4: #{model_forward.1} parent=0 // pred_region
    _
  $region5: #{model_forward.1} parent=0 // pred_fallthru
    _
  // Predicated region
  $region6: #{model_forward.1} parent=0 // pred_check
    _
  $region7: #{model_forward.1} parent=0 // pred_check_branch
    %13 = sbr.rel (0) target = $region9
  $region8: #{model_forward.1} parent=0 // pred_region
    _
  $region9: #{model_forward.1} parent=0 // pred_fallthru
    _
  // Predicated region
  $region10: #{model_forward.1} parent=0 // pred_check
    _
  $region11: #{model_forward.1} parent=0 // pred_check_branch
    %15 = sbr.rel (0) target = $region13
  $region12: #{model_forward.1} parent=0 // pred_region
    _
  $region13: #{model_forward.1} parent=0 // pred_fallthru
    _
  %vm16 = vcmask 130048
  %17 = vst.msk [vmem:[#allocation2] sm:$0xff] %vm16, -inf
  %18 = vst.msk [vmem:[#allocation2 + $0x8] sm:$0xff] %vm16, -inf
  %19 = vst.msk [vmem:[#allocation2 + $0x10] sm:$0xff] %vm16, -inf
  %20 = vst.msk [vmem:[#allocation2 + $0x18] sm:$0xff] %vm16, -inf
  %21 = vst.msk [vmem:[#allocation2 + $0x20] sm:$0xff] %vm16, -inf
  %22 = vst.msk [vmem:[#allocation2 + $0x28] sm:$0xff] %vm16, -inf
  %23 = vst.msk [vmem:[#allocation2 + $0x30] sm:$0xff] %vm16, -inf
  %v24 = vld [vmem:[%s0] sm:$0xff]
  %25 = vst.msk [vmem:[#allocation2] sm:$0xff] %vm16, %v24
  %v26 = vld [vmem:[%s2] sm:$0xff]
  %v27 = vld [vmem:[%s2 + $0x8] sm:$0xff]
  %v28 = vld [vmem:[%s2 + $0x10] sm:$0xff]
  %v29 = vld [vmem:[%s2 + $0x18] sm:$0xff]
  %v30 = vld [vmem:[%s2 + $0x20] sm:$0xff]
  %v31 = vld [vmem:[%s2 + $0x28] sm:$0xff]
  %vm32 = vcmask 80896
  %33 = vst.msk [vmem:[#allocation2 + $0x8] sm:$0xff] %vm32, %v26
  %34 = vst.msk [vmem:[#allocation2 + $0x10] sm:$0xff] %vm32, %v27
  %35 = vst.msk [vmem:[#allocation2 + $0x18] sm:$0xff] %vm32, %v28
  %36 = vst.msk [vmem:[#allocation2 + $0x20] sm:$0xff] %vm32, %v29
  %37 = vst.msk [vmem:[#allocation2 + $0x28] sm:$0xff] %vm32, %v30
  %38 = vst.msk [vmem:[#allocation2 + $0x30] sm:$0xff] %vm32, %v31
  %v39 = vld [vmem:[#allocation2] sm:$0xff]
  %v40 = vld [vmem:[#allocation2 + $0x8] sm:$0xff]
  %v41 = vld [vmem:[#allocation2 + $0x10] sm:$0xff]
  %v42 = vld [vmem:[#allocation2 + $0x18] sm:$0xff]
  %v43 = vld [vmem:[#allocation2 + $0x20] sm:$0xff]
  %v44 = vld [vmem:[#allocation2 + $0x28] sm:$0xff]
  %v45 = vld [vmem:[#allocation2 + $0x30] sm:$0xff]
  %v46 = vlaneseq
  %v47 = vand.u32 %v46, 127
  %v48 = vcvt.s32.f32 %v47
  %v49 = vsel %vm16, %v39, -inf
  %50 = vmax.xlane.f32.xlu0 %v49
  %v51 = vpop.xlane.xlu0 %50
  %v52 = vsel %vm16, %v40, -inf
  %53 = vmax.xlane.f32.xlu0 %v52
  %v54 = vpop.xlane.xlu0 %53
  %v55 = vsel %vm16, %v41, -inf
  %56 = vmax.xlane.f32.xlu0 %v55
  %v57 = vpop.xlane.xlu0 %56
  %v58 = vsel %vm16, %v42, -inf
  %59 = vmax.xlane.f32.xlu0 %v58
  %v60 = vpop.xlane.xlu0 %59
  %v61 = vsel %vm16, %v43, -inf
  %62 = vmax.xlane.f32.xlu0 %v61
  %v63 = vpop.xlane.xlu0 %62
  %v64 = vsel %vm16, %v44, -inf
  %65 = vmax.xlane.f32.xlu0 %v64
  %v66 = vpop.xlane.xlu0 %65
  %v67 = vsel %vm16, %v45, -inf
  %68 = vmax.xlane.f32.xlu0 %v67
  %v69 = vpop.xlane.xlu0 %68
  %vm70 = vcmp.eq.f32.partialorder %v39, %v51
  %vm71 = vcmp.eq.f32.partialorder %v40, %v54
  %vm72 = vcmp.eq.f32.partialorder %v41, %v57
  %vm73 = vcmp.eq.f32.partialorder %v42, %v60
  %vm74 = vcmp.eq.f32.partialorder %v43, %v63
  %vm75 = vcmp.eq.f32.partialorder %v44, %v66
  %vm76 = vcmp.eq.f32.partialorder %v45, %v69
  %v77 = vsel %vm70, %v48, 16.0
  %v78 = vsel %vm71, %v48, 16.0
  %v79 = vsel %vm72, %v48, 16.0
  %v80 = vsel %vm73, %v48, 16.0
  %v81 = vsel %vm74, %v48, 16.0
  %v82 = vsel %vm75, %v48, 16.0
  %v83 = vsel %vm76, %v48, 16.0
  %v84 = vsel %vm16, %v77, inf
  %85 = vmin.xlane.f32.xlu0 %v84
  %v86 = vpop.xlane.xlu0 %85
  %v87 = vsel %vm16, %v78, inf
  %88 = vmin.xlane.f32.xlu0 %v87
  %v89 = vpop.xlane.xlu0 %88
  %v90 = vsel %vm16, %v79, inf
  %91 = vmin.xlane.f32.xlu0 %v90
  %v92 = vpop.xlane.xlu0 %91
  %v93 = vsel %vm16, %v80, inf
  %94 = vmin.xlane.f32.xlu0 %v93
  %v95 = vpop.xlane.xlu0 %94
  %v96 = vsel %vm16, %v81, inf
  %97 = vmin.xlane.f32.xlu0 %v96
  %v98 = vpop.xlane.xlu0 %97
  %v99 = vsel %vm16, %v82, inf
  %100 = vmin.xlane.f32.xlu0 %v99
  %v101 = vpop.xlane.xlu0 %100
  %v102 = vsel %vm16, %v83, inf
  %103 = vmin.xlane.f32.xlu0 %v102
  %v104 = vpop.xlane.xlu0 %103
  %v105 = vcvt.f32.s32.to.zero.pseudo %v86
  %v106 = vcvt.f32.s32.to.zero.pseudo %v89
  %v107 = vcvt.f32.s32.to.zero.pseudo %v92
  %v108 = vcvt.f32.s32.to.zero.pseudo %v95
  %v109 = vcvt.f32.s32.to.zero.pseudo %v98
  %v110 = vcvt.f32.s32.to.zero.pseudo %v101
  %v111 = vcvt.f32.s32.to.zero.pseudo %v104
  %vm112 = vcmp.eq.s32.totalorder %v47, %v105
  %vm113 = vcmp.eq.s32.totalorder %v47, %v106
  %vm114 = vcmp.eq.s32.totalorder %v47, %v107
  %vm115 = vcmp.eq.s32.totalorder %v47, %v108
  %vm116 = vcmp.eq.s32.totalorder %v47, %v109
  %vm117 = vcmp.eq.s32.totalorder %v47, %v110
  %vm118 = vcmp.eq.s32.totalorder %v47, %v111
  %v119 = vsel %vm112, -inf, %v39
  %v120 = vsel %vm113, -inf, %v40
  %v121 = vsel %vm114, -inf, %v41
  %v122 = vsel %vm115, -inf, %v42
  %v123 = vsel %vm116, -inf, %v43
  %v124 = vsel %vm117, -inf, %v44
  %v125 = vsel %vm118, -inf, %v45
  %v126 = vsel %vm16, %v119, -inf
  %127 = vmax.xlane.f32.xlu0 %v126
  %v128 = vpop.xlane.xlu0 %127
  %v129 = vsel %vm16, %v120, -inf
  %130 = vmax.xlane.f32.xlu0 %v129
  %v131 = vpop.xlane.xlu0 %130
  %v132 = vsel %vm16, %v121, -inf
  %133 = vmax.xlane.f32.xlu0 %v132
  %v134 = vpop.xlane.xlu0 %133
  %v135 = vsel %vm16, %v122, -inf
  %136 = vmax.xlane.f32.xlu0 %v135
  %v137 = vpop.xlane.xlu0 %136
  %v138 = vsel %vm16, %v123, -inf
  %139 = vmax.xlane.f32.xlu0 %v138
  %v140 = vpop.xlane.xlu0 %139
  %v141 = vsel %vm16, %v124, -inf
  %142 = vmax.xlane.f32.xlu0 %v141
  %v143 = vpop.xlane.xlu0 %142
  %v144 = vsel %vm16, %v125, -inf
  %145 = vmax.xlane.f32.xlu0 %v144
  %v146 = vpop.xlane.xlu0 %145
  %vm147 = vcmp.eq.f32.partialorder %v119, %v128
  %vm148 = vcmp.eq.f32.partialorder %v120, %v131
  %vm149 = vcmp.eq.f32.partialorder %v121, %v134
  %vm150 = vcmp.eq.f32.partialorder %v122, %v137
  %vm151 = vcmp.eq.f32.partialorder %v123, %v140
  %vm152 = vcmp.eq.f32.partialorder %v124, %v143
  %vm153 = vcmp.eq.f32.partialorder %v125, %v146
  %vm154 = vmxor %vm112, 1
  %vm155 = vmxor %vm113, 1
  %vm156 = vmxor %vm114, 1
  %vm157 = vmxor %vm115, 1
  %vm158 = vmxor %vm116, 1
  %vm159 = vmxor %vm117, 1
  %vm160 = vmxor %vm118, 1
  %vm161 = vmand %vm147, %vm154
  %vm162 = vmand %vm148, %vm155
  %vm163 = vmand %vm149, %vm156
  %vm164 = vmand %vm150, %vm157
  %vm165 = vmand %vm151, %vm158
  %vm166 = vmand %vm152, %vm159
  %vm167 = vmand %vm153, %vm160
  %v168 = vsel %vm161, %v48, 16.0
  %v169 = vsel %vm162, %v48, 16.0
  %v170 = vsel %vm163, %v48, 16.0
  %v171 = vsel %vm164, %v48, 16.0
  %v172 = vsel %vm165, %v48, 16.0
  %v173 = vsel %vm166, %v48, 16.0
  %v174 = vsel %vm167, %v48, 16.0
  %v175 = vsel %vm16, %v168, inf
  %176 = vmin.xlane.f32.xlu0 %v175
  %v177 = vpop.xlane.xlu0 %176
  %v178 = vsel %vm16, %v169, inf
  %179 = vmin.xlane.f32.xlu0 %v178
  %v180 = vpop.xlane.xlu0 %179
  %v181 = vsel %vm16, %v170, inf
  %182 = vmin.xlane.f32.xlu0 %v181
  %v183 = vpop.xlane.xlu0 %182
  %v184 = vsel %vm16, %v171, inf
  %185 = vmin.xlane.f32.xlu0 %v184
  %v186 = vpop.xlane.xlu0 %185
  %v187 = vsel %vm16, %v172, inf
  %188 = vmin.xlane.f32.xlu0 %v187
  %v189 = vpop.xlane.xlu0 %188
  %v190 = vsel %vm16, %v173, inf
  %191 = vmin.xlane.f32.xlu0 %v190
  %v192 = vpop.xlane.xlu0 %191
  %v193 = vsel %vm16, %v174, inf
  %194 = vmin.xlane.f32.xlu0 %v193
  %v195 = vpop.xlane.xlu0 %194
  %v196 = vcvt.f32.s32.to.zero.pseudo %v177
  %v197 = vcvt.f32.s32.to.zero.pseudo %v180
  %v198 = vcvt.f32.s32.to.zero.pseudo %v183
  %v199 = vcvt.f32.s32.to.zero.pseudo %v186
  %v200 = vcvt.f32.s32.to.zero.pseudo %v189
  %v201 = vcvt.f32.s32.to.zero.pseudo %v192
  %v202 = vcvt.f32.s32.to.zero.pseudo %v195
  %vm203 = vcmp.eq.s32.totalorder %v47, %v196
  %vm204 = vcmp.eq.s32.totalorder %v47, %v197
  %vm205 = vcmp.eq.s32.totalorder %v47, %v198
  %vm206 = vcmp.eq.s32.totalorder %v47, %v199
  %vm207 = vcmp.eq.s32.totalorder %v47, %v200
  %vm208 = vcmp.eq.s32.totalorder %v47, %v201
  %vm209 = vcmp.eq.s32.totalorder %v47, %v202
  %vm210 = vmor %vm112, %vm203
  %vm211 = vmor %vm113, %vm204
  %vm212 = vmor %vm114, %vm205
  %vm213 = vmor %vm115, %vm206
  %vm214 = vmor %vm116, %vm207
  %vm215 = vmor %vm117, %vm208
  %vm216 = vmor %vm118, %vm209
  %v217 = vsel %vm210, -inf, %v39
  %v218 = vsel %vm211, -inf, %v40
  %v219 = vsel %vm212, -inf, %v41
  %v220 = vsel %vm213, -inf, %v42
  %v221 = vsel %vm214, -inf, %v43
  %v222 = vsel %vm215, -inf, %v44
  %v223 = vsel %vm216, -inf, %v45
  %v224 = vsel %vm16, %v217, -inf
  %225 = vmax.xlane.f32.xlu0 %v224
  %v226 = vpop.xlane.xlu0 %225
  %v227 = vsel %vm16, %v218, -inf
  %228 = vmax.xlane.f32.xlu0 %v227
  %v229 = vpop.xlane.xlu0 %228
  %v230 = vsel %vm16, %v219, -inf
  %231 = vmax.xlane.f32.xlu0 %v230
  %v232 = vpop.xlane.xlu0 %231
  %v233 = vsel %vm16, %v220, -inf
  %234 = vmax.xlane.f32.xlu0 %v233
  %v235 = vpop.xlane.xlu0 %234
  %v236 = vsel %vm16, %v221, -inf
  %237 = vmax.xlane.f32.xlu0 %v236
  %v238 = vpop.xlane.xlu0 %237
  %v239 = vsel %vm16, %v222, -inf
  %240 = vmax.xlane.f32.xlu0 %v239
  %v241 = vpop.xlane.xlu0 %240
  %v242 = vsel %vm16, %v223, -inf
  %243 = vmax.xlane.f32.xlu0 %v242
  %v244 = vpop.xlane.xlu0 %243
  %vm245 = vcmp.eq.f32.partialorder %v217, %v226
  %vm246 = vcmp.eq.f32.partialorder %v218, %v229
  %vm247 = vcmp.eq.f32.partialorder %v219, %v232
  %vm248 = vcmp.eq.f32.partialorder %v220, %v235
  %vm249 = vcmp.eq.f32.partialorder %v221, %v238
  %vm250 = vcmp.eq.f32.partialorder %v222, %v241
  %vm251 = vcmp.eq.f32.partialorder %v223, %v244
  %vm252 = vmxor %vm210, 1
  %vm253 = vmxor %vm211, 1
  %vm254 = vmxor %vm212, 1
  %vm255 = vmxor %vm213, 1
  %vm256 = vmxor %vm214, 1
  %vm257 = vmxor %vm215, 1
  %vm258 = vmxor %vm216, 1
  %vm259 = vmand %vm245, %vm252
  %vm260 = vmand %vm246, %vm253
  %vm261 = vmand %vm247, %vm254
  %vm262 = vmand %vm248, %vm255
  %vm263 = vmand %vm249, %vm256
  %vm264 = vmand %vm250, %vm257
  %vm265 = vmand %vm251, %vm258
  %v266 = vsel %vm259, %v48, 16.0
  %v267 = vsel %vm260, %v48, 16.0
  %v268 = vsel %vm261, %v48, 16.0
  %v269 = vsel %vm262, %v48, 16.0
  %v270 = vsel %vm263, %v48, 16.0
  %v271 = vsel %vm264, %v48, 16.0
  %v272 = vsel %vm265, %v48, 16.0
  %v273 = vsel %vm16, %v266, inf
  %274 = vmin.xlane.f32.xlu0 %v273
  %v275 = vpop.xlane.xlu0 %274
  %v276 = vsel %vm16, %v267, inf
  %277 = vmin.xlane.f32.xlu0 %v276
  %v278 = vpop.xlane.xlu0 %277
  %v279 = vsel %vm16, %v268, inf
  %280 = vmin.xlane.f32.xlu0 %v279
  %v281 = vpop.xlane.xlu0 %280
  %v282 = vsel %vm16, %v269, inf
  %283 = vmin.xlane.f32.xlu0 %v282
  %v284 = vpop.xlane.xlu0 %283
  %v285 = vsel %vm16, %v270, inf
  %286 = vmin.xlane.f32.xlu0 %v285
  %v287 = vpop.xlane.xlu0 %286
  %v288 = vsel %vm16, %v271, inf
  %289 = vmin.xlane.f32.xlu0 %v288
  %v290 = vpop.xlane.xlu0 %289
  %v291 = vsel %vm16, %v272, inf
  %292 = vmin.xlane.f32.xlu0 %v291
  %v293 = vpop.xlane.xlu0 %292
  %v294 = vcvt.f32.s32.to.zero.pseudo %v275
  %v295 = vcvt.f32.s32.to.zero.pseudo %v278
  %v296 = vcvt.f32.s32.to.zero.pseudo %v281
  %v297 = vcvt.f32.s32.to.zero.pseudo %v284
  %v298 = vcvt.f32.s32.to.zero.pseudo %v287
  %v299 = vcvt.f32.s32.to.zero.pseudo %v290
  %v300 = vcvt.f32.s32.to.zero.pseudo %v293
  %vm301 = vcmp.eq.s32.totalorder %v47, %v294
  %vm302 = vcmp.eq.s32.totalorder %v47, %v295
  %vm303 = vcmp.eq.s32.totalorder %v47, %v296
  %vm304 = vcmp.eq.s32.totalorder %v47, %v297
  %vm305 = vcmp.eq.s32.totalorder %v47, %v298
  %vm306 = vcmp.eq.s32.totalorder %v47, %v299
  %vm307 = vcmp.eq.s32.totalorder %v47, %v300
  %vm308 = vmor %vm210, %vm301
  %vm309 = vmor %vm211, %vm302
  %vm310 = vmor %vm212, %vm303
  %vm311 = vmor %vm213, %vm304
  %vm312 = vmor %vm214, %vm305
  %vm313 = vmor %vm215, %vm306
  %vm314 = vmor %vm216, %vm307
  %v315 = vsel %vm308, -inf, %v39
  %v316 = vsel %vm309, -inf, %v40
  %v317 = vsel %vm310, -inf, %v41
  %v318 = vsel %vm311, -inf, %v42
  %v319 = vsel %vm312, -inf, %v43
  %v320 = vsel %vm313, -inf, %v44
  %v321 = vsel %vm314, -inf, %v45
  %v322 = vsel %vm16, %v315, -inf
  %323 = vmax.xlane.f32.xlu0 %v322
  %v324 = vpop.xlane.xlu0 %323
  %v325 = vsel %vm16, %v316, -inf
  %326 = vmax.xlane.f32.xlu0 %v325
  %v327 = vpop.xlane.xlu0 %326
  %v328 = vsel %vm16, %v317, -inf
  %329 = vmax.xlane.f32.xlu0 %v328
  %v330 = vpop.xlane.xlu0 %329
  %v331 = vsel %vm16, %v318, -inf
  %332 = vmax.xlane.f32.xlu0 %v331
  %v333 = vpop.xlane.xlu0 %332
  %v334 = vsel %vm16, %v319, -inf
  %335 = vmax.xlane.f32.xlu0 %v334
  %v336 = vpop.xlane.xlu0 %335
  %v337 = vsel %vm16, %v320, -inf
  %338 = vmax.xlane.f32.xlu0 %v337
  %v339 = vpop.xlane.xlu0 %338
  %v340 = vsel %vm16, %v321, -inf
  %341 = vmax.xlane.f32.xlu0 %v340
  %v342 = vpop.xlane.xlu0 %341
  %vm343 = vcmp.eq.s32.totalorder %v47, 0
  %v344 = vsel %vm343, %v51, 0.0
  %v345 = vsel %vm343, %v54, 0.0
  %v346 = vsel %vm343, %v57, 0.0
  %v347 = vsel %vm343, %v60, 0.0
  %v348 = vsel %vm343, %v63, 0.0
  %v349 = vsel %vm343, %v66, 0.0
  %v350 = vsel %vm343, %v69, 0.0
  %vm351 = vcmp.eq.s32.totalorder %v47, 1
  %v352 = vsel %vm351, %v128, %v344
  %v353 = vsel %vm351, %v131, %v345
  %v354 = vsel %vm351, %v134, %v346
  %v355 = vsel %vm351, %v137, %v347
  %v356 = vsel %vm351, %v140, %v348
  %v357 = vsel %vm351, %v143, %v349
  %v358 = vsel %vm351, %v146, %v350
  %vm359 = vcmp.eq.s32.totalorder %v47, 2
  %v360 = vsel %vm359, %v226, %v352
  %v361 = vsel %vm359, %v229, %v353
  %v362 = vsel %vm359, %v232, %v354
  %v363 = vsel %vm359, %v235, %v355
  %v364 = vsel %vm359, %v238, %v356
  %v365 = vsel %vm359, %v241, %v357
  %v366 = vsel %vm359, %v244, %v358
  %vm367 = vcmp.eq.s32.totalorder %v47, 3
  %v368 = vsel %vm367, %v324, %v360
  %v369 = vsel %vm367, %v327, %v361
  %v370 = vsel %vm367, %v330, %v362
  %v371 = vsel %vm367, %v333, %v363
  %v372 = vsel %vm367, %v336, %v364
  %v373 = vsel %vm367, %v339, %v365
  %v374 = vsel %vm367, %v342, %v366
  %375 = vst [vmem:[%s3] sm:$0xff] %v368
  %376 = vst [vmem:[%s3 + $0x8] sm:$0xff] %v369
  %377 = vst [vmem:[%s3 + $0x10] sm:$0xff] %v370
  %378 = vst [vmem:[%s3 + $0x18] sm:$0xff] %v371
  %379 = vst [vmem:[%s3 + $0x20] sm:$0xff] %v372
  %380 = vst [vmem:[%s3 + $0x28] sm:$0xff] %v373
  %381 = vst [vmem:[%s3 + $0x30] sm:$0xff] %v374
  %v382 = vsel %vm343, %v106, 0
  %v383 = vsel %vm343, %v107, 0
  %v384 = vsel %vm343, %v108, 0
  %v385 = vsel %vm343, %v109, 0
  %v386 = vsel %vm343, %v110, 0
  %v387 = vsel %vm343, %v111, 0
  %v388 = vsel %vm351, %v197, %v382
  %v389 = vsel %vm351, %v198, %v383
  %v390 = vsel %vm351, %v199, %v384
  %v391 = vsel %vm351, %v200, %v385
  %v392 = vsel %vm351, %v201, %v386
  %v393 = vsel %vm351, %v202, %v387
  %v394 = vsel %vm359, %v295, %v388
  %v395 = vsel %vm359, %v296, %v389
  %v396 = vsel %vm359, %v297, %v390
  %v397 = vsel %vm359, %v298, %v391
  %v398 = vsel %vm359, %v299, %v392
  %v399 = vsel %vm359, %v300, %v393
  %400 = vst [vmem:[%s4] sm:$0xff] %v394
  %401 = vst [vmem:[%s4 + $0x8] sm:$0xff] %v395
  %402 = vst [vmem:[%s4 + $0x10] sm:$0xff] %v396
  %403 = vst [vmem:[%s4 + $0x18] sm:$0xff] %v397
  %404 = vst [vmem:[%s4 + $0x20] sm:$0xff] %v398
  %405 = vst [vmem:[%s4 + $0x28] sm:$0xff] %v399
  %v406 = vld [vmem:[%s1] sm:$0xff]
  %v407 = vld [vmem:[%s1 + $0x8] sm:$0x3]
  %410 = vrot.lane.b32.xlu0 %v406, 117
  %v411 = vpop.permute.xlu0 %410
  %412 = vrot.lane.b32.xlu0 %v407, 117
  %v413 = vpop.permute.xlu0 %412
  %v416 = vmin.f32 %v406, %v411
  %v417 = vmin.f32 %v407, %v413
  %418 = vrot.lane.b32.xlu0 %v406, 106
  %v419 = vpop.permute.xlu0 %418
  %420 = vrot.lane.b32.xlu0 %v407, 106
  %v421 = vpop.permute.xlu0 %420
  %v424 = vmin.f32 %v416, %v419
  %v425 = vmin.f32 %v417, %v421
  %426 = vrot.lane.b32.xlu0 %v406, 95
  %v427 = vpop.permute.xlu0 %426
  %428 = vrot.lane.b32.xlu0 %v407, 95
  %v429 = vpop.permute.xlu0 %428
  %v432 = vmin.f32 %v424, %v427
  %v433 = vmin.f32 %v425, %v429
  %434 = vrot.lane.b32.xlu0 %v406, 84
  %v435 = vpop.permute.xlu0 %434
  %436 = vrot.lane.b32.xlu0 %v407, 84
  %v437 = vpop.permute.xlu0 %436
  %v440 = vmin.f32 %v432, %v435
  %v441 = vmin.f32 %v433, %v437
  %442 = vrot.lane.b32.xlu0 %v406, 73
  %v443 = vpop.permute.xlu0 %442
  %444 = vrot.lane.b32.xlu0 %v407, 73
  %v445 = vpop.permute.xlu0 %444
  %v448 = vmin.f32 %v440, %v443
  %v449 = vmin.f32 %v441, %v445
  %450 = vrot.lane.b32.xlu0 %v406, 62
  %v451 = vpop.permute.xlu0 %450
  %452 = vrot.lane.b32.xlu0 %v407, 62
  %v453 = vpop.permute.xlu0 %452
  %v456 = vmin.f32 %v448, %v451
  %v457 = vmin.f32 %v449, %v453
  %458 = vrot.lane.b32.xlu0 %v406, 51
  %v459 = vpop.permute.xlu0 %458
  %460 = vrot.lane.b32.xlu0 %v407, 51
  %v461 = vpop.permute.xlu0 %460
  %v464 = vmin.f32 %v456, %v459
  %v465 = vmin.f32 %v457, %v461
  %466 = vrot.lane.b32.xlu0 %v406, 40
  %v467 = vpop.permute.xlu0 %466
  %468 = vrot.lane.b32.xlu0 %v407, 40
  %v469 = vpop.permute.xlu0 %468
  %v472 = vmin.f32 %v464, %v467
  %v473 = vmin.f32 %v465, %v469
  %vm474 = vcmask 89088
  %475 = vst.msk [vmem:[%s3 + $0x38] sm:$0xff] %vm474, %v472
  %vm476 = vcmask 82944
  %477 = vst.msk [vmem:[%s3 + $0x40] sm:$0x3] %vm476, %v473
  // Predicated region
  $region14: #{model_forward.1} parent=0 // pred_check
    _
  $region15: #{model_forward.1} parent=0 // pred_check_branch
    %479 = sbr.rel (0) target = $region17
  $region16: #{model_forward.1} parent=0 // pred_region
    _
  $region17: #{model_forward.1} parent=0 // pred_fallthru
    _
  // Predicated region
  $region18: #{model_forward.1} parent=0 // pred_check
    _
  $region19: #{model_forward.1} parent=0 // pred_check_branch
    %481 = sbr.rel (0) target = $region21
  $region20: #{model_forward.1} parent=0 // pred_region
    _
  $region21: #{model_forward.1} parent=0 // pred_fallthru
    _
  // Predicated region
  $region22: #{model_forward.1} parent=0 // pred_check
    _
  $region23: #{model_forward.1} parent=0 // pred_check_branch
    %483 = sbr.rel (0) target = $region25
  $region24: #{model_forward.1} parent=0 // pred_region
    _
  $region25: #{model_forward.1} parent=0 // pred_fallthru
    _
  // Predicated region
  $region26: #{model_forward.1} parent=0 // pred_check
    _
  $region27: #{model_forward.1} parent=0 // pred_check_branch
    %485 = sbr.rel (0) target = $region29
  $region28: #{model_forward.1} parent=0 // pred_region
    _
  $region29: #{model_forward.1} parent=0 // pred_fallthru
    _

</llo_original>
